<compile_context>
chip_gen: v7x
topology: tpu7x:2x2x1
jax: 0.10.0
libtpu: 0.0.40
codegen_flags: <defaults>
</compile_context>

<pallas_src>
import functools
import math

import jax
import jax.numpy as jnp
from jax.experimental import pallas as pl
from jax.experimental.pallas import tpu as pltpu

LN_EPS = 1e-5


def _round_up(x, m):
    return (x + m - 1) // m * m


def lightweight_attention_kernel(x_ref, wq_ref, wk_ref, wv_ref, wo_ref,
                                 bq_ref, bk_ref, bv_ref, bo_ref,
                                 gamma_ref, beta_ref, o_ref,
                                 *, d_model, head_dim):
    """Grid = (batch, head); one (batch, head) pair per step.

    x_ref:          (1, N, Dp) f32  current batch's tokens (lane-padded)
    wq/wk/wv_ref:   (H, Dp, Hp) bf16 per-head in-projection (y = x @ W layout)
    wo_ref:         (H, Hp, Dp) bf16 per-head rows of the out-projection
    bq/bk/bv_ref:   (H, 1, Hp)  f32
    bo/gamma/beta:  (1, Dp)     f32
    o_ref:          (1, N, Dp)  f32  resident accumulator across the head axis
    """
    h = pl.program_id(1)
    last_h = pl.num_programs(1) - 1
    scale = 1.0 / math.sqrt(head_dim)
    inv_d = 1.0 / d_model

    @pl.when(h == 0)
    def _():
        o_ref[...] = jnp.zeros_like(o_ref)

    x = x_ref[0]                                       # (N, Dp) f32
    xb = x.astype(jnp.bfloat16)

    # Per-head projections: (N, Dp) @ (Dp, Hp) MXU matmuls, f32 accumulation.
    q = jnp.dot(xb, wq_ref[h], preferred_element_type=jnp.float32) + bq_ref[h]
    k = jnp.dot(xb, wk_ref[h], preferred_element_type=jnp.float32) + bk_ref[h]
    v = jnp.dot(xb, wv_ref[h], preferred_element_type=jnp.float32) + bv_ref[h]

    # Scores: contract the head dims directly (no transpose op).
    s = jax.lax.dot_general(q.astype(jnp.bfloat16), k.astype(jnp.bfloat16),
                            (((1,), (1,)), ((), ())),
                            preferred_element_type=jnp.float32) * scale   # (N, N)
    s = s - jnp.max(s, axis=-1, keepdims=True)         # numerically-stable softmax
    p = jnp.exp(s)
    l = jnp.sum(p, axis=-1, keepdims=True)
    ctx = jnp.dot(p.astype(jnp.bfloat16), v.astype(jnp.bfloat16),
                  preferred_element_type=jnp.float32)                     # (N, Hp)
    # Deferred normalization: EUP reciprocal, scales N*hd elems instead of N*N.
    ctx = ctx * pl.reciprocal(l, approx=True)

    # This head's slice of the output projection, accumulated in place.
    o_ref[0] += jnp.dot(ctx.astype(jnp.bfloat16), wo_ref[h],
                        preferred_element_type=jnp.float32)               # (N, Dp)

    @pl.when(h == last_h)
    def _():
        # Residual + LayerNorm (PyTorch: biased variance, eps=1e-5).
        res = x + o_ref[0] + bo_ref[...]               # padded lanes stay exactly 0
        # Fused single-pass stats; padded lanes are zero so sums over Dp == over D.
        mean = jnp.sum(res, axis=-1, keepdims=True) * inv_d
        msq = jnp.sum(res * res, axis=-1, keepdims=True) * inv_d
        var = msq - mean * mean
        y = (res - mean) * jax.lax.rsqrt(var + LN_EPS)
        o_ref[0] = y * gamma_ref[...] + beta_ref[...]  # padded gamma/beta = 0


def lightweight_attention(x, params, num_heads):
    """x: (B, N, D) batch-first features -> (B, N, D)."""
    B, N, D = x.shape
    assert D % num_heads == 0
    hd = D // num_heads
    Dp = _round_up(D, 128)      # lane-dense model dim
    Hp = _round_up(hd, 128)     # lane-dense per-head dim
    wq, wk, wv, wo, bq, bk, bv, bo, gamma, beta = params

    # --- one-time layout work in the wrapper (head-major, lane-padded) ---
    def in_proj_w(w):           # (D, D) -> (H, Dp, Hp) bf16 MXU operand
        w3 = w.reshape(D, num_heads, hd).transpose(1, 0, 2)
        return jnp.pad(w3, ((0, 0), (0, Dp - D), (0, Hp - hd))).astype(jnp.bfloat16)

    def out_proj_w(w):          # (D, D) -> (H, Hp, Dp) bf16 MXU operand
        w3 = w.reshape(num_heads, hd, D)
        return jnp.pad(w3, ((0, 0), (0, Hp - hd), (0, Dp - D))).astype(jnp.bfloat16)

    def in_proj_b(b):           # (1, D) -> (H, 1, Hp) f32
        return jnp.pad(b.reshape(num_heads, 1, hd), ((0, 0), (0, 0), (0, Hp - hd)))

    def row_vec(v):             # (1, D) -> (1, Dp) f32
        return jnp.pad(v, ((0, 0), (0, Dp - D)))

    xp = jnp.pad(x, ((0, 0), (0, 0), (0, Dp - D)))     # f32, padded lanes zero

    kernel = functools.partial(lightweight_attention_kernel,
                               d_model=D, head_dim=hd)

    # Whole-array blocks with a constant index_map: DMA'd once, VMEM-resident.
    def resident(shape):
        nd = len(shape)
        return pl.BlockSpec(shape, lambda b, h, _nd=nd: (0,) * _nd)

    out = pl.pallas_call(
        kernel,
        out_shape=jax.ShapeDtypeStruct((B, N, Dp), jnp.float32),
        grid=(B, num_heads),
        in_specs=[
            pl.BlockSpec((1, N, Dp), lambda b, h: (b, 0, 0)),   # x (resident across h)
            resident((num_heads, Dp, Hp)),                      # wq
            resident((num_heads, Dp, Hp)),                      # wk
            resident((num_heads, Dp, Hp)),                      # wv
            resident((num_heads, Hp, Dp)),                      # wo
            resident((num_heads, 1, Hp)),                       # bq
            resident((num_heads, 1, Hp)),                       # bk
            resident((num_heads, 1, Hp)),                       # bv
            resident((1, Dp)),                                  # bo
            resident((1, Dp)),                                  # gamma
            resident((1, Dp)),                                  # beta
        ],
        out_specs=pl.BlockSpec((1, N, Dp), lambda b, h: (b, 0, 0)),
        compiler_params=pltpu.CompilerParams(
            # batch axis -> both TensorCores on v7x; head axis is a reduction.
            dimension_semantics=("parallel", "arbitrary")),
    )(xp, in_proj_w(wq), in_proj_w(wk), in_proj_w(wv), out_proj_w(wo),
      in_proj_b(bq), in_proj_b(bk), in_proj_b(bv),
      row_vec(bo), row_vec(gamma), row_vec(beta))

    return out[:, :, :D]


def init_params(key, d_model):
    """Deterministic params matching nn.MultiheadAttention + LayerNorm shapes.

    Weights are stored in the y = x @ W layout (i.e. PyTorch's in_proj /
    out_proj weights transposed); LayerNorm gamma=1, beta=0 (PyTorch defaults).
    """
    ks = jax.random.split(key, 8)
    bound = 1.0 / math.sqrt(d_model)

    def u(k, shape):
        return jax.random.uniform(k, shape, jnp.float32, -bound, bound)

    wq = u(ks[0], (d_model, d_model))
    wk = u(ks[1], (d_model, d_model))
    wv = u(ks[2], (d_model, d_model))
    wo = u(ks[3], (d_model, d_model))
    bq = u(ks[4], (1, d_model))
    bk = u(ks[5], (1, d_model))
    bv = u(ks[6], (1, d_model))
    bo = u(ks[7], (1, d_model))
    gamma = jnp.ones((1, d_model), jnp.float32)
    beta = jnp.zeros((1, d_model), jnp.float32)
    return (wq, wk, wv, wo, bq, bk, bv, bo, gamma, beta)


def reference_forward(x, params, num_heads):
    """Pure-JAX f32 reference of the PyTorch forward (for correctness check)."""
    wq, wk, wv, wo, bq, bk, bv, bo, gamma, beta = params
    B, N, D = x.shape
    hd = D // num_heads
    q = x @ wq + bq[0]
    k = x @ wk + bk[0]
    v = x @ wv + bv[0]

    def split(t):
        return t.reshape(B, N, num_heads, hd).transpose(0, 2, 1, 3)

    qh, kh, vh = split(q), split(k), split(v)
    s = jnp.einsum('bhqd,bhkd->bhqk', qh, kh) / math.sqrt(hd)
    p = jax.nn.softmax(s, axis=-1)
    ctx = jnp.einsum('bhqk,bhkd->bhqd', p, vh).transpose(0, 2, 1, 3).reshape(B, N, D)
    attn = ctx @ wo + bo[0]
    res = x + attn
    mean = res.mean(-1, keepdims=True)
    var = ((res - mean) ** 2).mean(-1, keepdims=True)
    return (res - mean) * jax.lax.rsqrt(var + LN_EPS) * gamma[0] + beta[0]


if __name__ == "__main__":
    key = jax.random.PRNGKey(0)
    k_in, k_par = jax.random.split(key)

    # LightweightAttention(d_model=32, num_heads=4); features: [B=2, N=8, C=32]
    B, N, D, H = 2, 8, 32, 4
    x = jax.random.normal(k_in, (B, N, D), jnp.float32)
    params = init_params(k_par, D)

    out = lightweight_attention(x, params, H)
    out = jax.block_until_ready(out)

    assert out.shape == (B, N, D), out.shape
    assert bool(jnp.all(jnp.isfinite(out)))

    ref = reference_forward(x, params, H)
    max_err = float(jnp.max(jnp.abs(out - ref)))
    # Tolerance reflects bf16 MXU operands + approx EUP reciprocal (observed ~1e-3).
    assert max_err < 3e-2, f"mismatch vs reference: {max_err}"

    print("KERNEL_OK")
</pallas_src>

<mosaic_0001>
module attributes {stable_mosaic.version = 11 : i64} {
  func.func @lightweight_attention_kernel(%arg0: i32, %arg1: i32, %arg2: memref<1x8x128xf32, #tpu.memory_space<vmem>>, %arg3: memref<4x128x128xbf16, #tpu.memory_space<vmem>>, %arg4: memref<4x128x128xbf16, #tpu.memory_space<vmem>>, %arg5: memref<4x128x128xbf16, #tpu.memory_space<vmem>>, %arg6: memref<4x128x128xbf16, #tpu.memory_space<vmem>>, %arg7: memref<4x1x128xf32, #tpu.memory_space<vmem>>, %arg8: memref<4x1x128xf32, #tpu.memory_space<vmem>>, %arg9: memref<4x1x128xf32, #tpu.memory_space<vmem>>, %arg10: memref<1x128xf32, #tpu.memory_space<vmem>>, %arg11: memref<1x128xf32, #tpu.memory_space<vmem>>, %arg12: memref<1x128xf32, #tpu.memory_space<vmem>>, %arg13: memref<1x8x128xf32, #tpu.memory_space<vmem>>) attributes {dimension_semantics = [#tpu.dimension_semantics<parallel>, #tpu.dimension_semantics<arbitrary>], iteration_bounds = array<i64: 2, 4>, scalar_prefetch = 0 : i64, scratch_operands = 0 : i64, tpu.core_type = #tpu.core_type<tc>, window_params = [{transform_indices = @transform_0, window_bounds = array<i64: 1, 8, 128>}, {pipeline_mode = #tpu.pipeline_mode<synchronous>, transform_indices = @transform_1, window_bounds = array<i64: 4, 128, 128>}, {pipeline_mode = #tpu.pipeline_mode<synchronous>, transform_indices = @transform_2, window_bounds = array<i64: 4, 128, 128>}, {pipeline_mode = #tpu.pipeline_mode<synchronous>, transform_indices = @transform_3, window_bounds = array<i64: 4, 128, 128>}, {pipeline_mode = #tpu.pipeline_mode<synchronous>, transform_indices = @transform_4, window_bounds = array<i64: 4, 128, 128>}, {pipeline_mode = #tpu.pipeline_mode<synchronous>, transform_indices = @transform_5, window_bounds = array<i64: 4, 1, 128>}, {pipeline_mode = #tpu.pipeline_mode<synchronous>, transform_indices = @transform_6, window_bounds = array<i64: 4, 1, 128>}, {pipeline_mode = #tpu.pipeline_mode<synchronous>, transform_indices = @transform_7, window_bounds = array<i64: 4, 1, 128>}, {pipeline_mode = #tpu.pipeline_mode<synchronous>, transform_indices = @transform_8, window_bounds = array<i64: 1, 128>}, {pipeline_mode = #tpu.pipeline_mode<synchronous>, transform_indices = @transform_9, window_bounds = array<i64: 1, 128>}, {pipeline_mode = #tpu.pipeline_mode<synchronous>, transform_indices = @transform_10, window_bounds = array<i64: 1, 128>}, {transform_indices = @transform_11, window_bounds = array<i64: 1, 8, 128>}]} {
    %c0_i32 = arith.constant 0 : i32
    %0 = arith.cmpi eq, %arg1, %c0_i32 : i32
    %1 = arith.extui %0 : i1 to i32
    %c0_i32_0 = arith.constant 0 : i32
    %2 = arith.cmpi ne, %1, %c0_i32_0 : i32
    scf.if %2 {
      %cst_32 = arith.constant 0.000000e+00 : f32
      %65 = vector.broadcast %cst_32 : f32 to vector<1x8x128xf32>
      %c0_33 = arith.constant 0 : index
      %c0_34 = arith.constant 0 : index
      %c0_35 = arith.constant 0 : index
      %66 = vector.load %arg13[%c0_33, %c0_34, %c0_35] : memref<1x8x128xf32, #tpu.memory_space<vmem>>, vector<1x8x128xf32>
      tpu.vector_store %arg13[%c0_33, %c0_34, %c0_35], %65 {strides = array<i32>} : memref<1x8x128xf32, #tpu.memory_space<vmem>>, vector<1x8x128xf32>,
    } else {
    }
    %c0 = arith.constant 0 : index
    %c0_1 = arith.constant 0 : index
    %c0_2 = arith.constant 0 : index
    %3 = vector.load %arg2[%c0, %c0_1, %c0_2] : memref<1x8x128xf32, #tpu.memory_space<vmem>>, vector<1x8x128xf32>
    %4 = vector.shape_cast %3 : vector<1x8x128xf32> to vector<8x128xf32>
    %5 = arith.truncf %4 : vector<8x128xf32> to vector<8x128xbf16>
    %6 = arith.index_cast %arg1 : i32 to index
    %c0_3 = arith.constant 0 : index
    %c0_4 = arith.constant 0 : index
    %7 = vector.load %arg3[%6, %c0_3, %c0_4] : memref<4x128x128xbf16, #tpu.memory_space<vmem>>, vector<1x128x128xbf16>
    %8 = vector.shape_cast %7 : vector<1x128x128xbf16> to vector<128x128xbf16>
    %cst = arith.constant dense<0.000000e+00> : vector<8x128xf32>
    %9 = tpu.matmul %5, %8, %cst {dimension_numbers = #tpu.dot_dimension_numbers<[1], [0], [0], [1], [0, 0, 1, 1], [], []>} : vector<8x128xbf16>, vector<128x128xbf16>, vector<8x128xf32> -> vector<8x128xf32>
    %10 = arith.index_cast %arg1 : i32 to index
    %c0_5 = arith.constant 0 : index
    %c0_6 = arith.constant 0 : index
    %11 = vector.load %arg7[%10, %c0_5, %c0_6] : memref<4x1x128xf32, #tpu.memory_space<vmem>>, vector<1x1x128xf32>
    %12 = vector.shape_cast %11 : vector<1x1x128xf32> to vector<1x128xf32>
    %13 = vector.broadcast %12 : vector<1x128xf32> to vector<8x128xf32>
    %14 = arith.addf %9, %13 : vector<8x128xf32>
    %15 = arith.index_cast %arg1 : i32 to index
    %c0_7 = arith.constant 0 : index
    %c0_8 = arith.constant 0 : index
    %16 = vector.load %arg4[%15, %c0_7, %c0_8] : memref<4x128x128xbf16, #tpu.memory_space<vmem>>, vector<1x128x128xbf16>
    %17 = vector.shape_cast %16 : vector<1x128x128xbf16> to vector<128x128xbf16>
    %cst_9 = arith.constant dense<0.000000e+00> : vector<8x128xf32>
    %18 = tpu.matmul %5, %17, %cst_9 {dimension_numbers = #tpu.dot_dimension_numbers<[1], [0], [0], [1], [0, 0, 1, 1], [], []>} : vector<8x128xbf16>, vector<128x128xbf16>, vector<8x128xf32> -> vector<8x128xf32>
    %19 = arith.index_cast %arg1 : i32 to index
    %c0_10 = arith.constant 0 : index
    %c0_11 = arith.constant 0 : index
    %20 = vector.load %arg8[%19, %c0_10, %c0_11] : memref<4x1x128xf32, #tpu.memory_space<vmem>>, vector<1x1x128xf32>
    %21 = vector.shape_cast %20 : vector<1x1x128xf32> to vector<1x128xf32>
    %22 = vector.broadcast %21 : vector<1x128xf32> to vector<8x128xf32>
    %23 = arith.addf %18, %22 : vector<8x128xf32>
    %24 = arith.index_cast %arg1 : i32 to index
    %c0_12 = arith.constant 0 : index
    %c0_13 = arith.constant 0 : index
    %25 = vector.load %arg5[%24, %c0_12, %c0_13] : memref<4x128x128xbf16, #tpu.memory_space<vmem>>, vector<1x128x128xbf16>
    %26 = vector.shape_cast %25 : vector<1x128x128xbf16> to vector<128x128xbf16>
    %cst_14 = arith.constant dense<0.000000e+00> : vector<8x128xf32>
    %27 = tpu.matmul %5, %26, %cst_14 {dimension_numbers = #tpu.dot_dimension_numbers<[1], [0], [0], [1], [0, 0, 1, 1], [], []>} : vector<8x128xbf16>, vector<128x128xbf16>, vector<8x128xf32> -> vector<8x128xf32>
    %28 = arith.index_cast %arg1 : i32 to index
    %c0_15 = arith.constant 0 : index
    %c0_16 = arith.constant 0 : index
    %29 = vector.load %arg9[%28, %c0_15, %c0_16] : memref<4x1x128xf32, #tpu.memory_space<vmem>>, vector<1x1x128xf32>
    %30 = vector.shape_cast %29 : vector<1x1x128xf32> to vector<1x128xf32>
    %31 = vector.broadcast %30 : vector<1x128xf32> to vector<8x128xf32>
    %32 = arith.addf %27, %31 : vector<8x128xf32>
    %33 = arith.truncf %14 : vector<8x128xf32> to vector<8x128xbf16>
    %34 = arith.truncf %23 : vector<8x128xf32> to vector<8x128xbf16>
    %cst_17 = arith.constant dense<0.000000e+00> : vector<8x8xf32>
    %35 = tpu.matmul %33, %34, %cst_17 {dimension_numbers = #tpu.dot_dimension_numbers<[1], [1], [0], [0], [0, 0, 1, 0], [], []>} : vector<8x128xbf16>, vector<8x128xbf16>, vector<8x8xf32> -> vector<8x8xf32>
    %cst_18 = arith.constant 0.353553385 : f32
    %36 = vector.broadcast %cst_18 : f32 to vector<8x8xf32>
    %37 = arith.mulf %35, %36 : vector<8x8xf32>
    %cst_19 = arith.constant dense<0xFF800000> : vector<8xf32>
    %38 = vector.multi_reduction <maximumf>, %37, %cst_19 [1] : vector<8x8xf32> to vector<8xf32>
    %39 = vector.shape_cast %38 : vector<8xf32> to vector<8x1xf32>
    %40 = vector.broadcast %39 : vector<8x1xf32> to vector<8x8xf32>
    %41 = arith.subf %37, %40 : vector<8x8xf32>
    %42 = math.exp %41 : vector<8x8xf32>
    %cst_20 = arith.constant dense<0.000000e+00> : vector<8xf32>
    %43 = vector.multi_reduction <add>, %42, %cst_20 [1] : vector<8x8xf32> to vector<8xf32>
    %44 = vector.shape_cast %43 : vector<8xf32> to vector<8x1xf32>
    %45 = arith.truncf %42 : vector<8x8xf32> to vector<8x8xbf16>
    %46 = arith.truncf %32 : vector<8x128xf32> to vector<8x128xbf16>
    %cst_21 = arith.constant dense<0.000000e+00> : vector<8x128xf32>
    %47 = tpu.matmul %45, %46, %cst_21 {dimension_numbers = #tpu.dot_dimension_numbers<[1], [0], [0], [1], [0, 0, 1, 1], [], []>} : vector<8x8xbf16>, vector<8x128xbf16>, vector<8x128xf32> -> vector<8x128xf32>
    %48 = tpu.reciprocal %44 {approx = true} : vector<8x1xf32> -> vector<8x1xf32>
    %49 = vector.broadcast %48 : vector<8x1xf32> to vector<8x128xf32>
    %50 = arith.mulf %47, %49 : vector<8x128xf32>
    %c0_22 = arith.constant 0 : index
    %c0_23 = arith.constant 0 : index
    %c0_24 = arith.constant 0 : index
    %51 = vector.load %arg13[%c0_22, %c0_23, %c0_24] : memref<1x8x128xf32, #tpu.memory_space<vmem>>, vector<1x8x128xf32>
    %52 = vector.shape_cast %51 : vector<1x8x128xf32> to vector<8x128xf32>
    %53 = arith.truncf %50 : vector<8x128xf32> to vector<8x128xbf16>
    %54 = arith.index_cast %arg1 : i32 to index
    %c0_25 = arith.constant 0 : index
    %c0_26 = arith.constant 0 : index
    %55 = vector.load %arg6[%54, %c0_25, %c0_26] : memref<4x128x128xbf16, #tpu.memory_space<vmem>>, vector<1x128x128xbf16>
    %56 = vector.shape_cast %55 : vector<1x128x128xbf16> to vector<128x128xbf16>
    %cst_27 = arith.constant dense<0.000000e+00> : vector<8x128xf32>
    %57 = tpu.matmul %53, %56, %cst_27 {dimension_numbers = #tpu.dot_dimension_numbers<[1], [0], [0], [1], [0, 0, 1, 1], [], []>} : vector<8x128xbf16>, vector<128x128xbf16>, vector<8x128xf32> -> vector<8x128xf32>
    %58 = arith.addf %52, %57 : vector<8x128xf32>
    %c0_28 = arith.constant 0 : index
    %c0_29 = arith.constant 0 : index
    %c0_30 = arith.constant 0 : index
    %59 = vector.load %arg13[%c0_28, %c0_29, %c0_30] : memref<1x8x128xf32, #tpu.memory_space<vmem>>, vector<1x8x128xf32>
    %60 = vector.shape_cast %59 : vector<1x8x128xf32> to vector<8x128xf32>
    %61 = vector.shape_cast %58 : vector<8x128xf32> to vector<1x8x128xf32>
    tpu.vector_store %arg13[%c0_28, %c0_29, %c0_30], %61 {strides = array<i32>} : memref<1x8x128xf32, #tpu.memory_space<vmem>>, vector<1x8x128xf32>,
    %c3_i32 = arith.constant 3 : i32
    %62 = arith.cmpi eq, %arg1, %c3_i32 : i32
    %63 = arith.extui %62 : i1 to i32
    %c0_i32_31 = arith.constant 0 : i32
    %64 = arith.cmpi ne, %63, %c0_i32_31 : i32
    scf.if %64 {
      %c0_32 = arith.constant 0 : index
      %c0_33 = arith.constant 0 : index
      %c0_34 = arith.constant 0 : index
      %65 = vector.load %arg13[%c0_32, %c0_33, %c0_34] : memref<1x8x128xf32, #tpu.memory_space<vmem>>, vector<1x8x128xf32>
      %66 = vector.shape_cast %65 : vector<1x8x128xf32> to vector<8x128xf32>
      %67 = arith.addf %4, %66 : vector<8x128xf32>
      %c0_35 = arith.constant 0 : index
      %c0_36 = arith.constant 0 : index
      %68 = vector.load %arg10[%c0_35, %c0_36] : memref<1x128xf32, #tpu.memory_space<vmem>>, vector<1x128xf32>
      %69 = vector.broadcast %68 : vector<1x128xf32> to vector<8x128xf32>
      %70 = arith.addf %67, %69 : vector<8x128xf32>
      %cst_37 = arith.constant dense<0.000000e+00> : vector<8xf32>
      %71 = vector.multi_reduction <add>, %70, %cst_37 [1] : vector<8x128xf32> to vector<8xf32>
      %72 = vector.shape_cast %71 : vector<8xf32> to vector<8x1xf32>
      %cst_38 = arith.constant 3.125000e-02 : f32
      %73 = vector.broadcast %cst_38 : f32 to vector<8x1xf32>
      %74 = arith.mulf %72, %73 : vector<8x1xf32>
      %75 = arith.mulf %70, %70 : vector<8x128xf32>
      %cst_39 = arith.constant dense<0.000000e+00> : vector<8xf32>
      %76 = vector.multi_reduction <add>, %75, %cst_39 [1] : vector<8x128xf32> to vector<8xf32>
      %77 = vector.shape_cast %76 : vector<8xf32> to vector<8x1xf32>
      %cst_40 = arith.constant 3.125000e-02 : f32
      %78 = vector.broadcast %cst_40 : f32 to vector<8x1xf32>
      %79 = arith.mulf %77, %78 : vector<8x1xf32>
      %80 = arith.mulf %74, %74 : vector<8x1xf32>
      %81 = arith.subf %79, %80 : vector<8x1xf32>
      %82 = vector.broadcast %74 : vector<8x1xf32> to vector<8x128xf32>
      %83 = arith.subf %70, %82 : vector<8x128xf32>
      %cst_41 = arith.constant 9.99999974E-6 : f32
      %84 = vector.broadcast %cst_41 : f32 to vector<8x1xf32>
      %85 = arith.addf %81, %84 : vector<8x1xf32>
      %86 = math.rsqrt %85 : vector<8x1xf32>
      %87 = vector.broadcast %86 : vector<8x1xf32> to vector<8x128xf32>
      %88 = arith.mulf %83, %87 : vector<8x128xf32>
      %c0_42 = arith.constant 0 : index
      %c0_43 = arith.constant 0 : index
      %89 = vector.load %arg11[%c0_42, %c0_43] : memref<1x128xf32, #tpu.memory_space<vmem>>, vector<1x128xf32>
      %90 = vector.broadcast %89 : vector<1x128xf32> to vector<8x128xf32>
      %91 = arith.mulf %88, %90 : vector<8x128xf32>
      %c0_44 = arith.constant 0 : index
      %c0_45 = arith.constant 0 : index
      %92 = vector.load %arg12[%c0_44, %c0_45] : memref<1x128xf32, #tpu.memory_space<vmem>>, vector<1x128xf32>
      %93 = vector.broadcast %92 : vector<1x128xf32> to vector<8x128xf32>
      %94 = arith.addf %91, %93 : vector<8x128xf32>
      %c0_46 = arith.constant 0 : index
      %c0_47 = arith.constant 0 : index
      %c0_48 = arith.constant 0 : index
      %95 = vector.load %arg13[%c0_46, %c0_47, %c0_48] : memref<1x8x128xf32, #tpu.memory_space<vmem>>, vector<1x8x128xf32>
      %96 = vector.shape_cast %95 : vector<1x8x128xf32> to vector<8x128xf32>
      %97 = vector.shape_cast %94 : vector<8x128xf32> to vector<1x8x128xf32>
      tpu.vector_store %arg13[%c0_46, %c0_47, %c0_48], %97 {strides = array<i32>} : memref<1x8x128xf32, #tpu.memory_space<vmem>>, vector<1x8x128xf32>,
    } else {
    }
    return
  }
  func.func @transform_0(%arg0: i32, %arg1: i32) -> (i32, i32, i32) {
    %c0_i32 = arith.constant 0 : i32
    %c0_i32_0 = arith.constant 0 : i32
    %c0_i32_1 = arith.constant 0 : i32
    return %arg0, %c0_i32, %c0_i32_0 : i32, i32, i32
  }
  func.func @transform_1(%arg0: i32, %arg1: i32) -> (i32, i32, i32) {
    %c0_i32 = arith.constant 0 : i32
    %c0_i32_0 = arith.constant 0 : i32
    %c0_i32_1 = arith.constant 0 : i32
    %c0_i32_2 = arith.constant 0 : i32
    return %c0_i32, %c0_i32_0, %c0_i32_1 : i32, i32, i32
  }
  func.func @transform_2(%arg0: i32, %arg1: i32) -> (i32, i32, i32) {
    %c0_i32 = arith.constant 0 : i32
    %c0_i32_0 = arith.constant 0 : i32
    %c0_i32_1 = arith.constant 0 : i32
    %c0_i32_2 = arith.constant 0 : i32
    return %c0_i32, %c0_i32_0, %c0_i32_1 : i32, i32, i32
  }
  func.func @transform_3(%arg0: i32, %arg1: i32) -> (i32, i32, i32) {
    %c0_i32 = arith.constant 0 : i32
    %c0_i32_0 = arith.constant 0 : i32
    %c0_i32_1 = arith.constant 0 : i32
    %c0_i32_2 = arith.constant 0 : i32
    return %c0_i32, %c0_i32_0, %c0_i32_1 : i32, i32, i32
  }
  func.func @transform_4(%arg0: i32, %arg1: i32) -> (i32, i32, i32) {
    %c0_i32 = arith.constant 0 : i32
    %c0_i32_0 = arith.constant 0 : i32
    %c0_i32_1 = arith.constant 0 : i32
    %c0_i32_2 = arith.constant 0 : i32
    return %c0_i32, %c0_i32_0, %c0_i32_1 : i32, i32, i32
  }
  func.func @transform_5(%arg0: i32, %arg1: i32) -> (i32, i32, i32) {
    %c0_i32 = arith.constant 0 : i32
    %c0_i32_0 = arith.constant 0 : i32
    %c0_i32_1 = arith.constant 0 : i32
    %c0_i32_2 = arith.constant 0 : i32
    return %c0_i32, %c0_i32_0, %c0_i32_1 : i32, i32, i32
  }
  func.func @transform_6(%arg0: i32, %arg1: i32) -> (i32, i32, i32) {
    %c0_i32 = arith.constant 0 : i32
    %c0_i32_0 = arith.constant 0 : i32
    %c0_i32_1 = arith.constant 0 : i32
    %c0_i32_2 = arith.constant 0 : i32
    return %c0_i32, %c0_i32_0, %c0_i32_1 : i32, i32, i32
  }
  func.func @transform_7(%arg0: i32, %arg1: i32) -> (i32, i32, i32) {
    %c0_i32 = arith.constant 0 : i32
    %c0_i32_0 = arith.constant 0 : i32
    %c0_i32_1 = arith.constant 0 : i32
    %c0_i32_2 = arith.constant 0 : i32
    return %c0_i32, %c0_i32_0, %c0_i32_1 : i32, i32, i32
  }
  func.func @transform_8(%arg0: i32, %arg1: i32) -> (i32, i32) {
    %c0_i32 = arith.constant 0 : i32
    %c0_i32_0 = arith.constant 0 : i32
    %c0_i32_1 = arith.constant 0 : i32
    return %c0_i32, %c0_i32_0 : i32, i32
  }
  func.func @transform_9(%arg0: i32, %arg1: i32) -> (i32, i32) {
    %c0_i32 = arith.constant 0 : i32
    %c0_i32_0 = arith.constant 0 : i32
    %c0_i32_1 = arith.constant 0 : i32
    return %c0_i32, %c0_i32_0 : i32, i32
  }
  func.func @transform_10(%arg0: i32, %arg1: i32) -> (i32, i32) {
    %c0_i32 = arith.constant 0 : i32
    %c0_i32_0 = arith.constant 0 : i32
    %c0_i32_1 = arith.constant 0 : i32
    return %c0_i32, %c0_i32_0 : i32, i32
  }
  func.func @transform_11(%arg0: i32, %arg1: i32) -> (i32, i32, i32) {
    %c0_i32 = arith.constant 0 : i32
    %c0_i32_0 = arith.constant 0 : i32
    %c0_i32_1 = arith.constant 0 : i32
    return %arg0, %c0_i32, %c0_i32_0 : i32, i32, i32
  }
}

</mosaic_0001>

<llo_original>
// kernel: tpu_custom_call.1
$region0: #{tpu_custom_call.1}
  #allocation0 [shape = 'u32[]', space=smem, size = 0x4, offset = 0x4, fixed_abs, tag = 'smem constant byte address 0x4 - core index']
  #allocation1 [shape = 'u32[144,128]{1,0:T(1,128)}', space=vmem, size = 0x12000, scoped, tag = 'internal scratch']
  %s0 = inlined_call_operand.hbm [shape: f32[2,8,128], index: 0, kind: input, shape index: {}]
  %s1 = inlined_call_operand.hbm [shape: bf16[4,128,128], index: 1, kind: input, shape index: {}]
  %s2 = inlined_call_operand.hbm [shape: bf16[4,128,128], index: 2, kind: input, shape index: {}]
  %s3 = inlined_call_operand.hbm [shape: bf16[4,128,128], index: 3, kind: input, shape index: {}]
  %s4 = inlined_call_operand.hbm [shape: bf16[4,128,128], index: 4, kind: input, shape index: {}]
  %s5 = inlined_call_operand.vmem [shape: f32[4,1,128], index: 5, kind: input, shape index: {}]
  %s6 = inlined_call_operand.vmem [shape: f32[4,1,128], index: 6, kind: input, shape index: {}]
  %s7 = inlined_call_operand.vmem [shape: f32[4,1,128], index: 7, kind: input, shape index: {}]
  %s8 = inlined_call_operand.vmem [shape: f32[1,128], index: 8, kind: input, shape index: {}]
  %s9 = inlined_call_operand.vmem [shape: f32[1,128], index: 9, kind: input, shape index: {}]
  %s10 = inlined_call_operand.vmem [shape: f32[1,128], index: 10, kind: input, shape index: {}]
  %s11 = inlined_call_operand.hbm [shape: f32[2,8,128], index: 11, kind: output, shape index: {}]
  %s12 = sld [smem:[#allocation0]]
  $region105: #{tpu_custom_call.1} parent=0
    _
  %s14 = ssub.s32 1, %s12
  %s15 = scalar_select 0, %s14, %s12
  $region1: #{tpu_custom_call.1} parent=0
    #allocation2 [shape = 'u8[8192]{0}', space=vmem, size = 0x2000, scoped, tag = 'input window, operand 0']
    #allocation3 [shape = 's32[2]{0}', space=sflag, size = 0x8, scoped, tag = 'scoped memory for tpu_custom_call.1']
    #allocation4 [shape = 's32[2]{0}', space=sflag, size = 0x8, scoped, tag = 'scoped memory for tpu_custom_call.1']
    #allocation5 [shape = 'u8[131072]{0}', space=vmem, size = 0x20000, scoped, tag = 'input window, operand 1, single buffered']
    #allocation6 [shape = 's32[1]{0}', space=sflag, size = 0x4, scoped, tag = 'scoped memory for tpu_custom_call.1']
    #allocation7 [shape = 'u8[131072]{0}', space=vmem, size = 0x20000, scoped, tag = 'input window, operand 2, single buffered']
    #allocation8 [shape = 'u8[131072]{0}', space=vmem, size = 0x20000, scoped, tag = 'input window, operand 3, single buffered']
    #allocation9 [shape = 's32[1]{0}', space=sflag, size = 0x4, scoped, tag = 'scoped memory for tpu_custom_call.1']
    #allocation10 [shape = 'u8[131072]{0}', space=vmem, size = 0x20000, scoped, tag = 'input window, operand 4, single buffered']
    #allocation11 [shape = 'u8[8192]{0}', space=vmem, size = 0x2000, scoped, tag = 'output window, operand 0']
    %16 = vsyncpa [#allocation3], 0
    %s17 = scalar_lea.sflag [#allocation3], 1
    %18 = vsyncpa %s17, 0
    %19 = vsyncpa [#allocation6], 0
    %20 = vsyncpa [#allocation9], 0
    %21 = vsyncpa [#allocation4], 0
    %s22 = scalar_lea.sflag [#allocation4], 1
    %23 = vsyncpa %s22, 0
    loop: start=0, step=1, limit=10
    $region2: #{tpu_custom_call.1} parent=1 // loop_pre_header
      _
    $region3: #{tpu_custom_call.1} parent=1 // loop_header
      %s25 = sphi 0, %s29
      %p26 = scmp.ge.s32.totalorder %s25, 10
      %s32 = sphi 0, %s44
      %s33 = sphi 0, %s40
      %s34 = sphi 0, %s32
      %s35 = sphi 0, %s33
      %s36 = sphi 0, %s34
      %s37 = sphi 0, %s35
      %s47 = sphi 0, %s49
      %s50 = sphi 0, %s47
      %s51 = sphi 0, %s50
      %s67 = sphi 0, %s51
      %s71 = sphi 0, %s71
      %s73 = sphi 0, %s71
      %s74 = sphi 0, %s73
      %s88 = sphi 0, %s74
      %s92 = sphi 0, %s92
      %s94 = sphi 0, %s92
      %s95 = sphi 0, %s94
      %s109 = sphi 0, %s95
      %s113 = sphi 0, %s113
      %s115 = sphi 0, %s113
      %s116 = sphi 0, %s115
      %s130 = sphi 0, %s116
      %s134 = sphi 0, %s134
      %s136 = sphi 0, %s134
      %s137 = sphi 0, %s136
      %s151 = sphi 0, %s137
      %s155 = sphi 0, %s155
      %s157 = sphi 0, %s155
      %s158 = sphi 0, %s157
      %s172 = sphi 0, %s158
      %s176 = sphi 0, %s176
      %s178 = sphi 0, %s176
      %s179 = sphi 0, %s178
      %s193 = sphi 0, %s179
      %s197 = sphi 0, %s197
      %s199 = sphi 0, %s197
      %s200 = sphi 0, %s199
      %s214 = sphi 0, %s200
      %s218 = sphi 0, %s218
      %s220 = sphi 0, %s218
      %s221 = sphi 0, %s220
      %s235 = sphi 0, %s221
      %s239 = sphi 0, %s239
      %s241 = sphi 0, %s239
      %s242 = sphi 0, %s241
      %s256 = sphi 0, %s242
      %s260 = sphi 0, %s260
      %s262 = sphi 0, %s260
      %s263 = sphi 0, %s262
      %s277 = sphi 0, %s263
      %s283 = sphi 0, %s285
      %s286 = sphi 0, %s283
      %s287 = sphi 0, %s286
      %s303 = sphi 0, %s287
    $region4: #{tpu_custom_call.1} parent=1 // loop_header_branch
      %28 = sbr.rel (%p26) target = $region8
    $region5: #{tpu_custom_call.1} parent=1 // loop_body
      %s30 = ssub.s32 %s25, 1
      %s31 = ssub.s32 %s25, 2
      %s38 = sadd.s32 1, %s33
      %p39 = scmp.ge.s32.totalorder %s38, 4
      %s40 = scalar_select %p39, 0, %s38
      %s41 = sadd.s32 1, %s32
      %s42 = scalar_select %p39, %s41, %s32
      %p43 = scmp.ge.s32.totalorder %s42, 2
      %s44 = scalar_select %p43, 0, %s42
      %s45 = ssub.s32 %s32, %s44
      %p46 = scmp.eq.s32.totalorder %s45, 0
      %s48 = sadd.s32 %s47, 1
      %s49 = scalar_select %p46, %s47, %s48
      %p52 = pneg %p46
      %p53 = scmp.eq.s32.totalorder %s25, 7
      %p54 = por %p52, %p53
      %p55 = scmp.ne.s32.totalorder %s47, %s50
      %p56 = scmp.eq.s32.totalorder %s25, 0
      %p57 = por %p55, %p56
      %p58 = scmp.ne.s32.totalorder %s47, %s50
      %p59 = scmp.eq.s32.totalorder %s30, 7
      %p60 = por %p58, %p59
      %p61 = scmp.ne.s32.totalorder %s50, %s51
      %p62 = scmp.eq.s32.totalorder %s30, 0
      %p63 = por %p61, %p62
      %p64 = scmp.ne.s32.totalorder %s50, %s51
      %p65 = scmp.eq.s32.totalorder %s31, 7
      %p66 = por %p64, %p65
      %p68 = scmp.ne.s32.totalorder %s51, %s67
      %p69 = scmp.eq.s32.totalorder %s31, 0
      %p70 = por %p68, %p69
      %s72 = sadd.s32 %s71, 1
      %p75 = scmp.eq.s32.totalorder %s25, 7
      %p76 = scmp.ne.s32.totalorder %s71, %s73
      %p77 = scmp.eq.s32.totalorder %s25, 0
      %p78 = por %p76, %p77
      %p79 = scmp.ne.s32.totalorder %s71, %s73
      %p80 = scmp.eq.s32.totalorder %s30, 7
      %p81 = por %p79, %p80
      %p82 = scmp.ne.s32.totalorder %s73, %s74
      %p83 = scmp.eq.s32.totalorder %s30, 0
      %p84 = por %p82, %p83
      %p85 = scmp.ne.s32.totalorder %s73, %s74
      %p86 = scmp.eq.s32.totalorder %s31, 7
      %p87 = por %p85, %p86
      %p89 = scmp.ne.s32.totalorder %s74, %s88
      %p90 = scmp.eq.s32.totalorder %s31, 0
      %p91 = por %p89, %p90
      %s93 = sadd.s32 %s92, 1
      %p96 = scmp.eq.s32.totalorder %s25, 7
      %p97 = scmp.ne.s32.totalorder %s92, %s94
      %p98 = scmp.eq.s32.totalorder %s25, 0
      %p99 = por %p97, %p98
      %p100 = scmp.ne.s32.totalorder %s92, %s94
      %p101 = scmp.eq.s32.totalorder %s30, 7
      %p102 = por %p100, %p101
      %p103 = scmp.ne.s32.totalorder %s94, %s95
      %p104 = scmp.eq.s32.totalorder %s30, 0
      %p105 = por %p103, %p104
      %p106 = scmp.ne.s32.totalorder %s94, %s95
      %p107 = scmp.eq.s32.totalorder %s31, 7
      %p108 = por %p106, %p107
      %p110 = scmp.ne.s32.totalorder %s95, %s109
      %p111 = scmp.eq.s32.totalorder %s31, 0
      %p112 = por %p110, %p111
      %s114 = sadd.s32 %s113, 1
      %p117 = scmp.eq.s32.totalorder %s25, 7
      %p118 = scmp.ne.s32.totalorder %s113, %s115
      %p119 = scmp.eq.s32.totalorder %s25, 0
      %p120 = por %p118, %p119
      %p121 = scmp.ne.s32.totalorder %s113, %s115
      %p122 = scmp.eq.s32.totalorder %s30, 7
      %p123 = por %p121, %p122
      %p124 = scmp.ne.s32.totalorder %s115, %s116
      %p125 = scmp.eq.s32.totalorder %s30, 0
      %p126 = por %p124, %p125
      %p127 = scmp.ne.s32.totalorder %s115, %s116
      %p128 = scmp.eq.s32.totalorder %s31, 7
      %p129 = por %p127, %p128
      %p131 = scmp.ne.s32.totalorder %s116, %s130
      %p132 = scmp.eq.s32.totalorder %s31, 0
      %p133 = por %p131, %p132
      %s135 = sadd.s32 %s134, 1
      %p138 = scmp.eq.s32.totalorder %s25, 7
      %p139 = scmp.ne.s32.totalorder %s134, %s136
      %p140 = scmp.eq.s32.totalorder %s25, 0
      %p141 = por %p139, %p140
      %p142 = scmp.ne.s32.totalorder %s134, %s136
      %p143 = scmp.eq.s32.totalorder %s30, 7
      %p144 = por %p142, %p143
      %p145 = scmp.ne.s32.totalorder %s136, %s137
      %p146 = scmp.eq.s32.totalorder %s30, 0
      %p147 = por %p145, %p146
      %p148 = scmp.ne.s32.totalorder %s136, %s137
      %p149 = scmp.eq.s32.totalorder %s31, 7
      %p150 = por %p148, %p149
      %p152 = scmp.ne.s32.totalorder %s137, %s151
      %p153 = scmp.eq.s32.totalorder %s31, 0
      %p154 = por %p152, %p153
      %s156 = sadd.s32 %s155, 1
      %p159 = scmp.eq.s32.totalorder %s25, 7
      %p160 = scmp.ne.s32.totalorder %s155, %s157
      %p161 = scmp.eq.s32.totalorder %s25, 0
      %p162 = por %p160, %p161
      %p163 = scmp.ne.s32.totalorder %s155, %s157
      %p164 = scmp.eq.s32.totalorder %s30, 7
      %p165 = por %p163, %p164
      %p166 = scmp.ne.s32.totalorder %s157, %s158
      %p167 = scmp.eq.s32.totalorder %s30, 0
      %p168 = por %p166, %p167
      %p169 = scmp.ne.s32.totalorder %s157, %s158
      %p170 = scmp.eq.s32.totalorder %s31, 7
      %p171 = por %p169, %p170
      %p173 = scmp.ne.s32.totalorder %s158, %s172
      %p174 = scmp.eq.s32.totalorder %s31, 0
      %p175 = por %p173, %p174
      %s177 = sadd.s32 %s176, 1
      %p180 = scmp.eq.s32.totalorder %s25, 7
      %p181 = scmp.ne.s32.totalorder %s176, %s178
      %p182 = scmp.eq.s32.totalorder %s25, 0
      %p183 = por %p181, %p182
      %p184 = scmp.ne.s32.totalorder %s176, %s178
      %p185 = scmp.eq.s32.totalorder %s30, 7
      %p186 = por %p184, %p185
      %p187 = scmp.ne.s32.totalorder %s178, %s179
      %p188 = scmp.eq.s32.totalorder %s30, 0
      %p189 = por %p187, %p188
      %p190 = scmp.ne.s32.totalorder %s178, %s179
      %p191 = scmp.eq.s32.totalorder %s31, 7
      %p192 = por %p190, %p191
      %p194 = scmp.ne.s32.totalorder %s179, %s193
      %p195 = scmp.eq.s32.totalorder %s31, 0
      %p196 = por %p194, %p195
      %s198 = sadd.s32 %s197, 1
      %p201 = scmp.eq.s32.totalorder %s25, 7
      %p202 = scmp.ne.s32.totalorder %s197, %s199
      %p203 = scmp.eq.s32.totalorder %s25, 0
      %p204 = por %p202, %p203
      %p205 = scmp.ne.s32.totalorder %s197, %s199
      %p206 = scmp.eq.s32.totalorder %s30, 7
      %p207 = por %p205, %p206
      %p208 = scmp.ne.s32.totalorder %s199, %s200
      %p209 = scmp.eq.s32.totalorder %s30, 0
      %p210 = por %p208, %p209
      %p211 = scmp.ne.s32.totalorder %s199, %s200
      %p212 = scmp.eq.s32.totalorder %s31, 7
      %p213 = por %p211, %p212
      %p215 = scmp.ne.s32.totalorder %s200, %s214
      %p216 = scmp.eq.s32.totalorder %s31, 0
      %p217 = por %p215, %p216
      %s219 = sadd.s32 %s218, 1
      %p222 = scmp.eq.s32.totalorder %s25, 7
      %p223 = scmp.ne.s32.totalorder %s218, %s220
      %p224 = scmp.eq.s32.totalorder %s25, 0
      %p225 = por %p223, %p224
      %p226 = scmp.ne.s32.totalorder %s218, %s220
      %p227 = scmp.eq.s32.totalorder %s30, 7
      %p228 = por %p226, %p227
      %p229 = scmp.ne.s32.totalorder %s220, %s221
      %p230 = scmp.eq.s32.totalorder %s30, 0
      %p231 = por %p229, %p230
      %p232 = scmp.ne.s32.totalorder %s220, %s221
      %p233 = scmp.eq.s32.totalorder %s31, 7
      %p234 = por %p232, %p233
      %p236 = scmp.ne.s32.totalorder %s221, %s235
      %p237 = scmp.eq.s32.totalorder %s31, 0
      %p238 = por %p236, %p237
      %s240 = sadd.s32 %s239, 1
      %p243 = scmp.eq.s32.totalorder %s25, 7
      %p244 = scmp.ne.s32.totalorder %s239, %s241
      %p245 = scmp.eq.s32.totalorder %s25, 0
      %p246 = por %p244, %p245
      %p247 = scmp.ne.s32.totalorder %s239, %s241
      %p248 = scmp.eq.s32.totalorder %s30, 7
      %p249 = por %p247, %p248
      %p250 = scmp.ne.s32.totalorder %s241, %s242
      %p251 = scmp.eq.s32.totalorder %s30, 0
      %p252 = por %p250, %p251
      %p253 = scmp.ne.s32.totalorder %s241, %s242
      %p254 = scmp.eq.s32.totalorder %s31, 7
      %p255 = por %p253, %p254
      %p257 = scmp.ne.s32.totalorder %s242, %s256
      %p258 = scmp.eq.s32.totalorder %s31, 0
      %p259 = por %p257, %p258
      %s261 = sadd.s32 %s260, 1
      %p264 = scmp.eq.s32.totalorder %s25, 7
      %p265 = scmp.ne.s32.totalorder %s260, %s262
      %p266 = scmp.eq.s32.totalorder %s25, 0
      %p267 = por %p265, %p266
      %p268 = scmp.ne.s32.totalorder %s260, %s262
      %p269 = scmp.eq.s32.totalorder %s30, 7
      %p270 = por %p268, %p269
      %p271 = scmp.ne.s32.totalorder %s262, %s263
      %p272 = scmp.eq.s32.totalorder %s30, 0
      %p273 = por %p271, %p272
      %p274 = scmp.ne.s32.totalorder %s262, %s263
      %p275 = scmp.eq.s32.totalorder %s31, 7
      %p276 = por %p274, %p275
      %p278 = scmp.ne.s32.totalorder %s263, %s277
      %p279 = scmp.eq.s32.totalorder %s31, 0
      %p280 = por %p278, %p279
      %s281 = ssub.s32 %s32, %s44
      %p282 = scmp.eq.s32.totalorder %s281, 0
      %s284 = sadd.s32 %s283, 1
      %s285 = scalar_select %p282, %s283, %s284
      %p288 = pneg %p282
      %p289 = scmp.eq.s32.totalorder %s25, 7
      %p290 = por %p288, %p289
      %p291 = scmp.ne.s32.totalorder %s283, %s286
      %p292 = scmp.eq.s32.totalorder %s25, 0
      %p293 = por %p291, %p292
      %p294 = scmp.ne.s32.totalorder %s283, %s286
      %p295 = scmp.eq.s32.totalorder %s30, 7
      %p296 = por %p294, %p295
      %p297 = scmp.ne.s32.totalorder %s286, %s287
      %p298 = scmp.eq.s32.totalorder %s30, 0
      %p299 = por %p297, %p298
      %p300 = scmp.ne.s32.totalorder %s286, %s287
      %p301 = scmp.eq.s32.totalorder %s31, 7
      %p302 = por %p300, %p301
      %p304 = scmp.ne.s32.totalorder %s287, %s303
      %p305 = scmp.eq.s32.totalorder %s31, 0
      %p306 = por %p304, %p305
      %p307 = scmp.le.s32.totalorder 1, %s25
      %p308 = scmp.lt.s32.totalorder %s25, 9
      %p309 = pnand %p307, %p308
      %p310 = pneg %p309
      // Predicated region
      $region9: #{tpu_custom_call.1} parent=5 // pred_check
        _
      $region10: #{tpu_custom_call.1} parent=5 // pred_check_branch
        %312 = sbr.rel (%p309) target = $region12
      $region11: #{tpu_custom_call.1} parent=5 // pred_region
        %s313 = ssub.s32 %s25, 1
        // Predicated region
        $region13: #{tpu_custom_call.1} parent=11 // pred_check
          %p314 = pneg %p84
        $region14: #{tpu_custom_call.1} parent=11 // pred_check_branch
          %316 = sbr.rel (%p314) target = $region16
        $region15: #{tpu_custom_call.1} parent=11 // pred_region
          %s318 = ssub.s32 4096, 4096
          %319 = vsyncadd [#allocation6], %s318
          %s320 = sshll.u32 [#allocation5], 4
          %s321 = int_to_ptr.vmem [resolvable:$true] %s320
          %326 = dma.hbm_to_vmem [thread:$0]  %s1, 4096, %s321, [#allocation6], 64, 64, 4
        $region16: #{tpu_custom_call.1} parent=11 // pred_fallthru
          _
        // Predicated region
        $region17: #{tpu_custom_call.1} parent=11 // pred_check
          %p327 = pneg %p105
        $region18: #{tpu_custom_call.1} parent=11 // pred_check_branch
          %329 = sbr.rel (%p327) target = $region20
        $region19: #{tpu_custom_call.1} parent=11 // pred_region
          %s331 = ssub.s32 4096, 4096
          %332 = vsyncadd [#allocation6], %s331
          %s333 = sshll.u32 [#allocation7], 4
          %s334 = int_to_ptr.vmem [resolvable:$true] %s333
          %339 = dma.hbm_to_vmem [thread:$0]  %s2, 4096, %s334, [#allocation6], 64, 64, 4
        $region20: #{tpu_custom_call.1} parent=11 // pred_fallthru
          _
        // Predicated region
        $region21: #{tpu_custom_call.1} parent=11 // pred_check
          %p340 = pneg %p126
        $region22: #{tpu_custom_call.1} parent=11 // pred_check_branch
          %342 = sbr.rel (%p340) target = $region24
        $region23: #{tpu_custom_call.1} parent=11 // pred_region
          %s344 = ssub.s32 4096, 4096
          %345 = vsyncadd [#allocation9], %s344
          %s346 = sshll.u32 [#allocation8], 4
          %s347 = int_to_ptr.vmem [resolvable:$true] %s346
          %352 = dma.hbm_to_vmem [thread:$0]  %s3, 4096, %s347, [#allocation9], 64, 64, 4
        $region24: #{tpu_custom_call.1} parent=11 // pred_fallthru
          _
        // Predicated region
        $region25: #{tpu_custom_call.1} parent=11 // pred_check
          %p353 = pneg %p147
        $region26: #{tpu_custom_call.1} parent=11 // pred_check_branch
          %355 = sbr.rel (%p353) target = $region28
        $region27: #{tpu_custom_call.1} parent=11 // pred_region
          %s357 = ssub.s32 4096, 4096
          %358 = vsyncadd [#allocation9], %s357
          %s359 = sshll.u32 [#allocation10], 4
          %s360 = int_to_ptr.vmem [resolvable:$true] %s359
          %365 = dma.hbm_to_vmem [thread:$0]  %s4, 4096, %s360, [#allocation9], 64, 64, 4
        $region28: #{tpu_custom_call.1} parent=11 // pred_fallthru
          _
        // Predicated region
        $region29: #{tpu_custom_call.1} parent=11 // pred_check
          %p366 = pneg %p168
        $region30: #{tpu_custom_call.1} parent=11 // pred_check_branch
          %368 = sbr.rel (%p366) target = $region32
        $region31: #{tpu_custom_call.1} parent=11 // pred_region
          _
        $region32: #{tpu_custom_call.1} parent=11 // pred_fallthru
          _
        // Predicated region
        $region33: #{tpu_custom_call.1} parent=11 // pred_check
          %p369 = pneg %p189
        $region34: #{tpu_custom_call.1} parent=11 // pred_check_branch
          %371 = sbr.rel (%p369) target = $region36
        $region35: #{tpu_custom_call.1} parent=11 // pred_region
          _
        $region36: #{tpu_custom_call.1} parent=11 // pred_fallthru
          _
        // Predicated region
        $region37: #{tpu_custom_call.1} parent=11 // pred_check
          %p372 = pneg %p210
        $region38: #{tpu_custom_call.1} parent=11 // pred_check_branch
          %374 = sbr.rel (%p372) target = $region40
        $region39: #{tpu_custom_call.1} parent=11 // pred_region
          _
        $region40: #{tpu_custom_call.1} parent=11 // pred_fallthru
          _
        // Predicated region
        $region41: #{tpu_custom_call.1} parent=11 // pred_check
          %p375 = pneg %p231
        $region42: #{tpu_custom_call.1} parent=11 // pred_check_branch
          %377 = sbr.rel (%p375) target = $region44
        $region43: #{tpu_custom_call.1} parent=11 // pred_region
          _
        $region44: #{tpu_custom_call.1} parent=11 // pred_fallthru
          _
        // Predicated region
        $region45: #{tpu_custom_call.1} parent=11 // pred_check
          %p378 = pneg %p252
        $region46: #{tpu_custom_call.1} parent=11 // pred_check_branch
          %380 = sbr.rel (%p378) target = $region48
        $region47: #{tpu_custom_call.1} parent=11 // pred_region
          _
        $region48: #{tpu_custom_call.1} parent=11 // pred_fallthru
          _
        // Predicated region
        $region49: #{tpu_custom_call.1} parent=11 // pred_check
          %p381 = pneg %p273
        $region50: #{tpu_custom_call.1} parent=11 // pred_check_branch
          %383 = sbr.rel (%p381) target = $region52
        $region51: #{tpu_custom_call.1} parent=11 // pred_region
          _
        $region52: #{tpu_custom_call.1} parent=11 // pred_fallthru
          _
      $region12: #{tpu_custom_call.1} parent=5 // pred_fallthru
        _
      %p384 = scmp.lt.s32.totalorder %s25, 8
      // Predicated region
      $region53: #{tpu_custom_call.1} parent=5 // pred_check
        %p385 = pneg %p384
      $region54: #{tpu_custom_call.1} parent=5 // pred_check_branch
        %387 = sbr.rel (%p385) target = $region56
      $region55: #{tpu_custom_call.1} parent=5 // pred_region
        // Predicated region
        $region57: #{tpu_custom_call.1} parent=55 // pred_check
          %p388 = pneg %p57
        $region58: #{tpu_custom_call.1} parent=55 // pred_check_branch
          %390 = sbr.rel (%p388) target = $region60
        $region59: #{tpu_custom_call.1} parent=55 // pred_region
          %s391 = sand.u32 %s47, 1
          %s392 = scalar_lea.sflag [#allocation3], %s391
          %s393 = sand.u32 %s47, 1
          %s394 = smul.addr %s393, 8
          %s395 = scalar_lea.vmem [#allocation2], %s394
          %s397 = ssub.s32 128, 128
          %398 = vsyncadd %s392, %s397
          %s399 = smul.addr %s32, 128
          %s400 = scalar_lea.hbm %s0, %s399
          %s402 = sshll.u32 %s395, 4
          %s403 = int_to_ptr.vmem [resolvable:$true] %s402
          %405 = dma.hbm_to_vmem [thread:$0]  %s400, 128, %s403, %s392
        $region60: #{tpu_custom_call.1} parent=55 // pred_fallthru
          _
      $region56: #{tpu_custom_call.1} parent=5 // pred_fallthru
        _
      %p406 = scmp.le.s32.totalorder 1, %s25
      %p407 = scmp.lt.s32.totalorder %s25, 9
      %p408 = pnand %p406, %p407
      %p409 = pneg %p408
      // Predicated region
      $region61: #{tpu_custom_call.1} parent=5 // pred_check
        _
      $region62: #{tpu_custom_call.1} parent=5 // pred_check_branch
        %411 = sbr.rel (%p408) target = $region64
      $region63: #{tpu_custom_call.1} parent=5 // pred_region
        %s412 = ssub.s32 %s25, 1
        %s413 = sand.u32 %s50, 1
        %s414 = scalar_lea.sflag [#allocation3], %s413
        %s415 = sand.u32 %s50, 1
        %s416 = smul.addr %s415, 8
        %s417 = scalar_lea.vmem [#allocation2], %s416
        // Predicated region
        $region65: #{tpu_custom_call.1} parent=63 // pred_check
          %p418 = pneg %p63
        $region66: #{tpu_custom_call.1} parent=63 // pred_check_branch
          %420 = sbr.rel (%p418) target = $region68
        $region67: #{tpu_custom_call.1} parent=63 // pred_region
          %421 = dma.done %s414, 128
        $region68: #{tpu_custom_call.1} parent=63 // pred_fallthru
          _
        // Predicated region
        $region69: #{tpu_custom_call.1} parent=63 // pred_check
          %p422 = pneg %p84
        $region70: #{tpu_custom_call.1} parent=63 // pred_check_branch
          %424 = sbr.rel (%p422) target = $region72
        $region71: #{tpu_custom_call.1} parent=63 // pred_region
          %425 = dma.done [#allocation6], 4096
        $region72: #{tpu_custom_call.1} parent=63 // pred_fallthru
          _
        // Predicated region
        $region73: #{tpu_custom_call.1} parent=63 // pred_check
          %p426 = pneg %p105
        $region74: #{tpu_custom_call.1} parent=63 // pred_check_branch
          %428 = sbr.rel (%p426) target = $region76
        $region75: #{tpu_custom_call.1} parent=63 // pred_region
          %429 = dma.done [#allocation6], 4096
        $region76: #{tpu_custom_call.1} parent=63 // pred_fallthru
          _
        // Predicated region
        $region77: #{tpu_custom_call.1} parent=63 // pred_check
          %p430 = pneg %p126
        $region78: #{tpu_custom_call.1} parent=63 // pred_check_branch
          %432 = sbr.rel (%p430) target = $region80
        $region79: #{tpu_custom_call.1} parent=63 // pred_region
          %433 = dma.done [#allocation9], 4096
        $region80: #{tpu_custom_call.1} parent=63 // pred_fallthru
          _
        // Predicated region
        $region81: #{tpu_custom_call.1} parent=63 // pred_check
          %p434 = pneg %p147
        $region82: #{tpu_custom_call.1} parent=63 // pred_check_branch
          %436 = sbr.rel (%p434) target = $region84
        $region83: #{tpu_custom_call.1} parent=63 // pred_region
          %437 = dma.done [#allocation9], 4096
        $region84: #{tpu_custom_call.1} parent=63 // pred_fallthru
          _
        %s438 = sand.u32 %s50, 1
        %s439 = scalar_lea.sflag [#allocation3], %s438
        %s440 = sand.u32 %s50, 1
        %s441 = smul.addr %s440, 8
        %s442 = scalar_lea.vmem [#allocation2], %s441
        %p443 = pneg %p63
        %p444 = pneg %p60
        %p445 = pneg %p84
        %p446 = pneg %p81
        %p447 = pneg %p105
        %p448 = pneg %p102
        %p449 = pneg %p126
        %p450 = pneg %p123
        %p451 = pneg %p147
        %p452 = pneg %p144
        %p453 = pneg %p168
        %p454 = pneg %p165
        %p455 = pneg %p189
        %p456 = pneg %p186
        %p457 = pneg %p210
        %p458 = pneg %p207
        %p459 = pneg %p231
        %p460 = pneg %p228
        %p461 = pneg %p252
        %p462 = pneg %p249
        %p463 = pneg %p273
        %p464 = pneg %p270
        %p465 = pneg %p299
        %p466 = pneg %p296
        %s467 = sand.u32 %s286, 1
        %s468 = scalar_lea.sflag [#allocation4], %s467
        %s469 = sand.u32 %s286, 1
        %s470 = smul.addr %s469, 8
        %s471 = scalar_lea.vmem [#allocation11], %s470
        %p473 = scmp.eq.s32.totalorder %s35, 0
        // Predicated region
        $region85: #{tpu_custom_call.1} parent=63 // pred_check
          %p474 = pneg %p473
        $region86: #{tpu_custom_call.1} parent=63 // pred_check_branch
          %476 = sbr.rel (%p474) target = $region88
        $region87: #{tpu_custom_call.1} parent=63 // pred_region
          %477 = vst [vmem:[%s471] sm:$0xff] 0.0
        $region88: #{tpu_custom_call.1} parent=63 // pred_fallthru
          _
        %v478 = vld [vmem:[%s417] sm:$0xff]
        %v479 = vpack.c.bf16 %v478, %v478
        %s480 = smul.u32 %s35, 16
        %s481 = smul.addr %s480, 4
        %s482 = scalar_lea.vmem [#allocation5], %s481
        %v483 = vld [vmem:[%s482] sm:$0xf]
        %v484 = vld [vmem:[%s482 + $0x4] sm:$0xf]
        %v485 = vld [vmem:[%s482 + $0x8] sm:$0xf]
        %v486 = vld [vmem:[%s482 + $0xc] sm:$0xf]
        %v487 = vld [vmem:[%s482 + $0x10] sm:$0xf]
        %v488 = vld [vmem:[%s482 + $0x14] sm:$0xf]
        %v489 = vld [vmem:[%s482 + $0x18] sm:$0xf]
        %v490 = vld [vmem:[%s482 + $0x1c] sm:$0xf]
        %v491 = vld [vmem:[%s482 + $0x20] sm:$0xf]
        %v492 = vld [vmem:[%s482 + $0x24] sm:$0xf]
        %v493 = vld [vmem:[%s482 + $0x28] sm:$0xf]
        %v494 = vld [vmem:[%s482 + $0x2c] sm:$0xf]
        %v495 = vld [vmem:[%s482 + $0x30] sm:$0xf]
        %v496 = vld [vmem:[%s482 + $0x34] sm:$0xf]
        %v497 = vld [vmem:[%s482 + $0x38] sm:$0xf]
        %v498 = vld [vmem:[%s482 + $0x3c] sm:$0xf]
        %s499 = scalar_lea.vmem %s5, %s35
        %v500 = vld [vmem:[%s499] sm:$0x1]
        %v502 = vlaneseq
        %v503 = vshrl.u32 %v502, 7
        %v504 = vsub.s32 0, %v503
        %v505 = vrot.slane %v500, %v504
        %v523 = vunpack.c.l.b16 %v483
        %v524 = vunpack.c.l.b16 %v484
        %v525 = vunpack.c.l.b16 %v485
        %v526 = vunpack.c.l.b16 %v486
        %v527 = vunpack.c.l.b16 %v487
        %v528 = vunpack.c.l.b16 %v488
        %v529 = vunpack.c.l.b16 %v489
        %v530 = vunpack.c.l.b16 %v490
        %v531 = vunpack.c.l.b16 %v491
        %v532 = vunpack.c.l.b16 %v492
        %v533 = vunpack.c.l.b16 %v493
        %v534 = vunpack.c.l.b16 %v494
        %v535 = vunpack.c.l.b16 %v495
        %v536 = vunpack.c.l.b16 %v496
        %v537 = vunpack.c.l.b16 %v497
        %v538 = vunpack.c.l.b16 %v498
        %v539 = vpack.c.b16 %v524, %v523
        %v540 = vpack.c.b16 %v526, %v525
        %v541 = vpack.c.b16 %v528, %v527
        %v542 = vpack.c.b16 %v530, %v529
        %v543 = vpack.c.b16 %v532, %v531
        %v544 = vpack.c.b16 %v534, %v533
        %v545 = vpack.c.b16 %v536, %v535
        %v546 = vpack.c.b16 %v538, %v537
        %555 = vmatprep.subr.bf16.mxu0 0
        %556 = vmatpush1.bf16.msra.mxu0 %v539
        %557 = vmatprep.subr.bf16.mxu0 0
        %558 = vmatpush1.bf16.msra.mxu0 %v540
        %559 = vmatprep.subr.bf16.mxu0 0
        %560 = vmatpush1.bf16.msra.mxu0 %v541
        %561 = vmatprep.subr.bf16.mxu0 0
        %562 = vmatpush1.bf16.msra.mxu0 %v542
        %563 = vmatprep.subr.bf16.mxu0 0
        %564 = vmatpush1.bf16.msra.mxu0 %v543
        %565 = vmatprep.subr.bf16.mxu0 0
        %566 = vmatpush1.bf16.msra.mxu0 %v544
        %567 = vmatprep.subr.bf16.mxu0 0
        %568 = vmatpush1.bf16.msra.mxu0 %v545
        %569 = vmatprep.subr.bf16.mxu0 0
        %570 = vmatpush1.bf16.msra.mxu0 %v546
        %571 = vmatprep.subr.bf16.mxu0 0
        %572 = vmatpush1.bf16.msra.mxu0 0
        %573 = vmatprep.subr.bf16.mxu0 0
        %574 = vmatpush1.bf16.msra.mxu0 0
        %575 = vmatprep.subr.bf16.mxu0 0
        %576 = vmatpush1.bf16.msra.mxu0 0
        %577 = vmatprep.subr.bf16.mxu0 0
        %578 = vmatpush1.bf16.msra.mxu0 0
        %579 = vmatprep.subr.bf16.mxu0 0
        %580 = vmatpush1.bf16.msra.mxu0 0
        %581 = vmatprep.subr.bf16.mxu0 0
        %582 = vmatpush1.bf16.msra.mxu0 0
        %583 = vmatprep.subr.bf16.mxu0 0
        %584 = vmatpush1.bf16.msra.mxu0 0
        %585 = vmatprep.subr.bf16.mxu0 0
        %586 = vmatpush1.bf16.msra.mxu0 0
        %587 = vmatprep.mubr.bf16.mxu0 0
        %588 = vmatmul.mubr.bf16.gmra.mrb[0].mxu0 %v479
        %v589 = vpop.f32.mrb[0].mxu0
        %v590 = vadd.f32 %v505, %v589
        %v591 = vpop.f32.mrb[0].mxu0
        %v592 = vpop.f32.mrb[0].mxu0
        %v593 = vpop.f32.mrb[0].mxu0
        %594 = vdwg.mxu0
        %s595 = smul.addr %s480, 4
        %s596 = scalar_lea.vmem [#allocation7], %s595
        %v597 = vld [vmem:[%s596] sm:$0xf]
        %v598 = vld [vmem:[%s596 + $0x4] sm:$0xf]
        %v599 = vld [vmem:[%s596 + $0x8] sm:$0xf]
        %v600 = vld [vmem:[%s596 + $0xc] sm:$0xf]
        %v601 = vld [vmem:[%s596 + $0x10] sm:$0xf]
        %v602 = vld [vmem:[%s596 + $0x14] sm:$0xf]
        %v603 = vld [vmem:[%s596 + $0x18] sm:$0xf]
        %v604 = vld [vmem:[%s596 + $0x1c] sm:$0xf]
        %v605 = vld [vmem:[%s596 + $0x20] sm:$0xf]
        %v606 = vld [vmem:[%s596 + $0x24] sm:$0xf]
        %v607 = vld [vmem:[%s596 + $0x28] sm:$0xf]
        %v608 = vld [vmem:[%s596 + $0x2c] sm:$0xf]
        %v609 = vld [vmem:[%s596 + $0x30] sm:$0xf]
        %v610 = vld [vmem:[%s596 + $0x34] sm:$0xf]
        %v611 = vld [vmem:[%s596 + $0x38] sm:$0xf]
        %v612 = vld [vmem:[%s596 + $0x3c] sm:$0xf]
        %s613 = scalar_lea.vmem %s6, %s35
        %v614 = vld [vmem:[%s613] sm:$0x1]
        %v616 = vlaneseq
        %v617 = vshrl.u32 %v616, 7
        %v618 = vsub.s32 0, %v617
        %v619 = vrot.slane %v614, %v618
        %v637 = vunpack.c.l.b16 %v597
        %v638 = vunpack.c.l.b16 %v598
        %v639 = vunpack.c.l.b16 %v599
        %v640 = vunpack.c.l.b16 %v600
        %v641 = vunpack.c.l.b16 %v601
        %v642 = vunpack.c.l.b16 %v602
        %v643 = vunpack.c.l.b16 %v603
        %v644 = vunpack.c.l.b16 %v604
        %v645 = vunpack.c.l.b16 %v605
        %v646 = vunpack.c.l.b16 %v606
        %v647 = vunpack.c.l.b16 %v607
        %v648 = vunpack.c.l.b16 %v608
        %v649 = vunpack.c.l.b16 %v609
        %v650 = vunpack.c.l.b16 %v610
        %v651 = vunpack.c.l.b16 %v611
        %v652 = vunpack.c.l.b16 %v612
        %v653 = vpack.c.b16 %v638, %v637
        %v654 = vpack.c.b16 %v640, %v639
        %v655 = vpack.c.b16 %v642, %v641
        %v656 = vpack.c.b16 %v644, %v643
        %v657 = vpack.c.b16 %v646, %v645
        %v658 = vpack.c.b16 %v648, %v647
        %v659 = vpack.c.b16 %v650, %v649
        %v660 = vpack.c.b16 %v652, %v651
        %669 = vmatprep.subr.bf16.mxu0 0
        %670 = vmatpush1.bf16.msra.mxu0 %v653
        %671 = vmatprep.subr.bf16.mxu0 0
        %672 = vmatpush1.bf16.msra.mxu0 %v654
        %673 = vmatprep.subr.bf16.mxu0 0
        %674 = vmatpush1.bf16.msra.mxu0 %v655
        %675 = vmatprep.subr.bf16.mxu0 0
        %676 = vmatpush1.bf16.msra.mxu0 %v656
        %677 = vmatprep.subr.bf16.mxu0 0
        %678 = vmatpush1.bf16.msra.mxu0 %v657
        %679 = vmatprep.subr.bf16.mxu0 0
        %680 = vmatpush1.bf16.msra.mxu0 %v658
        %681 = vmatprep.subr.bf16.mxu0 0
        %682 = vmatpush1.bf16.msra.mxu0 %v659
        %683 = vmatprep.subr.bf16.mxu0 0
        %684 = vmatpush1.bf16.msra.mxu0 %v660
        %685 = vmatprep.subr.bf16.mxu0 0
        %686 = vmatpush1.bf16.msra.mxu0 0
        %687 = vmatprep.subr.bf16.mxu0 0
        %688 = vmatpush1.bf16.msra.mxu0 0
        %689 = vmatprep.subr.bf16.mxu0 0
        %690 = vmatpush1.bf16.msra.mxu0 0
        %691 = vmatprep.subr.bf16.mxu0 0
        %692 = vmatpush1.bf16.msra.mxu0 0
        %693 = vmatprep.subr.bf16.mxu0 0
        %694 = vmatpush1.bf16.msra.mxu0 0
        %695 = vmatprep.subr.bf16.mxu0 0
        %696 = vmatpush1.bf16.msra.mxu0 0
        %697 = vmatprep.subr.bf16.mxu0 0
        %698 = vmatpush1.bf16.msra.mxu0 0
        %699 = vmatprep.subr.bf16.mxu0 0
        %700 = vmatpush1.bf16.msra.mxu0 0
        %701 = vmatprep.mubr.bf16.mxu0 0
        %702 = vmatmul.mubr.bf16.gmra.mrb[0].mxu0 %v479
        %v703 = vpop.f32.mrb[0].mxu0
        %v704 = vadd.f32 %v619, %v703
        %v705 = vpop.f32.mrb[0].mxu0
        %v706 = vpop.f32.mrb[0].mxu0
        %v707 = vpop.f32.mrb[0].mxu0
        %708 = vdwg.mxu0
        %s709 = smul.addr %s480, 4
        %s710 = scalar_lea.vmem [#allocation8], %s709
        %v711 = vld [vmem:[%s710] sm:$0xf]
        %v712 = vld [vmem:[%s710 + $0x4] sm:$0xf]
        %v713 = vld [vmem:[%s710 + $0x8] sm:$0xf]
        %v714 = vld [vmem:[%s710 + $0xc] sm:$0xf]
        %v715 = vld [vmem:[%s710 + $0x10] sm:$0xf]
        %v716 = vld [vmem:[%s710 + $0x14] sm:$0xf]
        %v717 = vld [vmem:[%s710 + $0x18] sm:$0xf]
        %v718 = vld [vmem:[%s710 + $0x1c] sm:$0xf]
        %v719 = vld [vmem:[%s710 + $0x20] sm:$0xf]
        %v720 = vld [vmem:[%s710 + $0x24] sm:$0xf]
        %v721 = vld [vmem:[%s710 + $0x28] sm:$0xf]
        %v722 = vld [vmem:[%s710 + $0x2c] sm:$0xf]
        %v723 = vld [vmem:[%s710 + $0x30] sm:$0xf]
        %v724 = vld [vmem:[%s710 + $0x34] sm:$0xf]
        %v725 = vld [vmem:[%s710 + $0x38] sm:$0xf]
        %v726 = vld [vmem:[%s710 + $0x3c] sm:$0xf]
        %s727 = scalar_lea.vmem %s7, %s35
        %v728 = vld [vmem:[%s727] sm:$0x1]
        %v730 = vlaneseq
        %v731 = vshrl.u32 %v730, 7
        %v732 = vsub.s32 0, %v731
        %v733 = vrot.slane %v728, %v732
        %v751 = vunpack.c.l.b16 %v711
        %v752 = vunpack.c.l.b16 %v712
        %v753 = vunpack.c.l.b16 %v713
        %v754 = vunpack.c.l.b16 %v714
        %v755 = vunpack.c.l.b16 %v715
        %v756 = vunpack.c.l.b16 %v716
        %v757 = vunpack.c.l.b16 %v717
        %v758 = vunpack.c.l.b16 %v718
        %v759 = vunpack.c.l.b16 %v719
        %v760 = vunpack.c.l.b16 %v720
        %v761 = vunpack.c.l.b16 %v721
        %v762 = vunpack.c.l.b16 %v722
        %v763 = vunpack.c.l.b16 %v723
        %v764 = vunpack.c.l.b16 %v724
        %v765 = vunpack.c.l.b16 %v725
        %v766 = vunpack.c.l.b16 %v726
        %v767 = vpack.c.b16 %v752, %v751
        %v768 = vpack.c.b16 %v754, %v753
        %v769 = vpack.c.b16 %v756, %v755
        %v770 = vpack.c.b16 %v758, %v757
        %v771 = vpack.c.b16 %v760, %v759
        %v772 = vpack.c.b16 %v762, %v761
        %v773 = vpack.c.b16 %v764, %v763
        %v774 = vpack.c.b16 %v766, %v765
        %783 = vmatprep.subr.bf16.mxu0 0
        %784 = vmatpush1.bf16.msra.mxu0 %v767
        %785 = vmatprep.subr.bf16.mxu0 0
        %786 = vmatpush1.bf16.msra.mxu0 %v768
        %787 = vmatprep.subr.bf16.mxu0 0
        %788 = vmatpush1.bf16.msra.mxu0 %v769
        %789 = vmatprep.subr.bf16.mxu0 0
        %790 = vmatpush1.bf16.msra.mxu0 %v770
        %791 = vmatprep.subr.bf16.mxu0 0
        %792 = vmatpush1.bf16.msra.mxu0 %v771
        %793 = vmatprep.subr.bf16.mxu0 0
        %794 = vmatpush1.bf16.msra.mxu0 %v772
        %795 = vmatprep.subr.bf16.mxu0 0
        %796 = vmatpush1.bf16.msra.mxu0 %v773
        %797 = vmatprep.subr.bf16.mxu0 0
        %798 = vmatpush1.bf16.msra.mxu0 %v774
        %799 = vmatprep.subr.bf16.mxu0 0
        %800 = vmatpush1.bf16.msra.mxu0 0
        %801 = vmatprep.subr.bf16.mxu0 0
        %802 = vmatpush1.bf16.msra.mxu0 0
        %803 = vmatprep.subr.bf16.mxu0 0
        %804 = vmatpush1.bf16.msra.mxu0 0
        %805 = vmatprep.subr.bf16.mxu0 0
        %806 = vmatpush1.bf16.msra.mxu0 0
        %807 = vmatprep.subr.bf16.mxu0 0
        %808 = vmatpush1.bf16.msra.mxu0 0
        %809 = vmatprep.subr.bf16.mxu0 0
        %810 = vmatpush1.bf16.msra.mxu0 0
        %811 = vmatprep.subr.bf16.mxu0 0
        %812 = vmatpush1.bf16.msra.mxu0 0
        %813 = vmatprep.subr.bf16.mxu0 0
        %814 = vmatpush1.bf16.msra.mxu0 0
        %815 = vmatprep.mubr.bf16.mxu0 0
        %816 = vmatmul.mubr.bf16.gmra.mrb[0].mxu0 %v479
        %v817 = vpop.f32.mrb[0].mxu0
        %v818 = vadd.f32 %v733, %v817
        %v819 = vpop.f32.mrb[0].mxu0
        %v820 = vpop.f32.mrb[0].mxu0
        %v821 = vpop.f32.mrb[0].mxu0
        %822 = vdwg.mxu0
        %v823 = vpack.c.bf16 %v590, %v590
        %v824 = vpack.c.bf16 %v704, %v704
        %825 = vmatprep.subr.bf16.mxu0 0
        %826 = vmatpush1.bf16.xpose.msra.mxu0 %v824
        %827 = vmatprep.subr.bf16.mxu0 0
        %828 = vmatpush1.bf16.xpose.msra.mxu0 0
        %829 = vmatprep.subr.bf16.mxu0 0
        %830 = vmatpush1.bf16.xpose.msra.mxu0 0
        %831 = vmatprep.subr.bf16.mxu0 0
        %832 = vmatpush1.bf16.xpose.msra.mxu0 0
        %833 = vmatprep.subr.bf16.mxu0 0
        %834 = vmatpush1.bf16.xpose.msra.mxu0 0
        %835 = vmatprep.subr.bf16.mxu0 0
        %836 = vmatpush1.bf16.xpose.msra.mxu0 0
        %837 = vmatprep.subr.bf16.mxu0 0
        %838 = vmatpush1.bf16.xpose.msra.mxu0 0
        %839 = vmatprep.subr.bf16.mxu0 0
        %840 = vmatpush1.bf16.xpose.msra.mxu0 0
        %841 = vmatprep.subr.bf16.mxu0 0
        %842 = vmatpush1.bf16.xpose.msra.mxu0 0
        %843 = vmatprep.subr.bf16.mxu0 0
        %844 = vmatpush1.bf16.xpose.msra.mxu0 0
        %845 = vmatprep.subr.bf16.mxu0 0
        %846 = vmatpush1.bf16.xpose.msra.mxu0 0
        %847 = vmatprep.subr.bf16.mxu0 0
        %848 = vmatpush1.bf16.xpose.msra.mxu0 0
        %849 = vmatprep.subr.bf16.mxu0 0
        %850 = vmatpush1.bf16.xpose.msra.mxu0 0
        %851 = vmatprep.subr.bf16.mxu0 0
        %852 = vmatpush1.bf16.xpose.msra.mxu0 0
        %853 = vmatprep.subr.bf16.mxu0 0
        %854 = vmatpush1.bf16.xpose.msra.mxu0 0
        %855 = vmatprep.subr.bf16.mxu0 0
        %856 = vmatpush1.bf16.xpose.msra.mxu0 0
        %857 = vmatprep.mubr.bf16.mxu0 0
        %858 = vmatmul.mubr.bf16.gmra.mrb[0].mxu0 %v823
        %v859 = vpop.f32.mrb[0].mxu0
        %v860 = vadd.f32 0.0, %v859
        %v861 = vpop.f32.mrb[0].mxu0
        %v862 = vpop.f32.mrb[0].mxu0
        %v863 = vpop.f32.mrb[0].mxu0
        %864 = vdwg.mxu0
        %v865 = vmul.f32 %v860, 0.35355338
        %vm866 = vcmask 64512
        %v867 = vsel %vm866, %v865, -inf
        %868 = vmax.xlane.f32.xlu0 %v867
        %v869 = vpop.xlane.xlu0 %868
        %v870 = vsub.f32 %v865, %v869
        %v871 = vmul.f32 %v870, 1.442695
        %v872 = vpow.pop %v871
        %v873 = vsel %vm866, %v872, 0.0
        %874 = vadd.xlane.f32.xlu0 %v873
        %v875 = vpop.xlane.xlu0 %874
        %v876 = vpack.c.bf16 %v872, %v872
        %v877 = vpack.c.bf16 %v818, %v818
        %v879 = vsel %vm866, %v876, 0
        %vm881 = vcmask 1043456
        %v883 = vsel %vm881, %v877, 0
        %885 = vmatprep.subr.bf16.mxu0 0
        %886 = vmatpush1.bf16.msra.mxu0 %v883
        %887 = vmatprep.subr.bf16.mxu0 0
        %888 = vmatpush1.bf16.msra.mxu0 0
        %889 = vmatprep.subr.bf16.mxu0 0
        %890 = vmatpush1.bf16.msra.mxu0 0
        %891 = vmatprep.subr.bf16.mxu0 0
        %892 = vmatpush1.bf16.msra.mxu0 0
        %893 = vmatprep.subr.bf16.mxu0 0
        %894 = vmatpush1.bf16.msra.mxu0 0
        %895 = vmatprep.subr.bf16.mxu0 0
        %896 = vmatpush1.bf16.msra.mxu0 0
        %897 = vmatprep.subr.bf16.mxu0 0
        %898 = vmatpush1.bf16.msra.mxu0 0
        %899 = vmatprep.subr.bf16.mxu0 0
        %900 = vmatpush1.bf16.msra.mxu0 0
        %901 = vmatprep.subr.bf16.mxu0 0
        %902 = vmatpush1.bf16.msra.mxu0 0
        %903 = vmatprep.subr.bf16.mxu0 0
        %904 = vmatpush1.bf16.msra.mxu0 0
        %905 = vmatprep.subr.bf16.mxu0 0
        %906 = vmatpush1.bf16.msra.mxu0 0
        %907 = vmatprep.subr.bf16.mxu0 0
        %908 = vmatpush1.bf16.msra.mxu0 0
        %909 = vmatprep.subr.bf16.mxu0 0
        %910 = vmatpush1.bf16.msra.mxu0 0
        %911 = vmatprep.subr.bf16.mxu0 0
        %912 = vmatpush1.bf16.msra.mxu0 0
        %913 = vmatprep.subr.bf16.mxu0 0
        %914 = vmatpush1.bf16.msra.mxu0 0
        %915 = vmatprep.subr.bf16.mxu0 0
        %916 = vmatpush1.bf16.msra.mxu0 0
        %917 = vmatprep.mubr.bf16.mxu0 0
        %918 = vmatmul.mubr.bf16.gmra.mrb[0].mxu0 %v879
        %v919 = vpop.f32.mrb[0].mxu0
        %v920 = vadd.f32 0.0, %v919
        %v921 = vpop.f32.mrb[0].mxu0
        %v922 = vpop.f32.mrb[0].mxu0
        %v923 = vpop.f32.mrb[0].mxu0
        %924 = vdwg.mxu0
        %v925 = vrcp.pop %v875
        %v926 = vmul.f32 %v920, %v925
        %v927 = vld [vmem:[%s471] sm:$0xff]
        %v928 = vpack.c.bf16 %v926, %v926
        %s929 = smul.addr %s480, 4
        %s930 = scalar_lea.vmem [#allocation10], %s929
        %v931 = vld [vmem:[%s930] sm:$0xf]
        %v932 = vld [vmem:[%s930 + $0x4] sm:$0xf]
        %v933 = vld [vmem:[%s930 + $0x8] sm:$0xf]
        %v934 = vld [vmem:[%s930 + $0xc] sm:$0xf]
        %v935 = vld [vmem:[%s930 + $0x10] sm:$0xf]
        %v936 = vld [vmem:[%s930 + $0x14] sm:$0xf]
        %v937 = vld [vmem:[%s930 + $0x18] sm:$0xf]
        %v938 = vld [vmem:[%s930 + $0x1c] sm:$0xf]
        %v939 = vld [vmem:[%s930 + $0x20] sm:$0xf]
        %v940 = vld [vmem:[%s930 + $0x24] sm:$0xf]
        %v941 = vld [vmem:[%s930 + $0x28] sm:$0xf]
        %v942 = vld [vmem:[%s930 + $0x2c] sm:$0xf]
        %v943 = vld [vmem:[%s930 + $0x30] sm:$0xf]
        %v944 = vld [vmem:[%s930 + $0x34] sm:$0xf]
        %v945 = vld [vmem:[%s930 + $0x38] sm:$0xf]
        %v946 = vld [vmem:[%s930 + $0x3c] sm:$0xf]
        %v963 = vunpack.c.l.b16 %v931
        %v964 = vunpack.c.l.b16 %v932
        %v965 = vunpack.c.l.b16 %v933
        %v966 = vunpack.c.l.b16 %v934
        %v967 = vunpack.c.l.b16 %v935
        %v968 = vunpack.c.l.b16 %v936
        %v969 = vunpack.c.l.b16 %v937
        %v970 = vunpack.c.l.b16 %v938
        %v971 = vunpack.c.l.b16 %v939
        %v972 = vunpack.c.l.b16 %v940
        %v973 = vunpack.c.l.b16 %v941
        %v974 = vunpack.c.l.b16 %v942
        %v975 = vunpack.c.l.b16 %v943
        %v976 = vunpack.c.l.b16 %v944
        %v977 = vunpack.c.l.b16 %v945
        %v978 = vunpack.c.l.b16 %v946
        %v979 = vpack.c.b16 %v964, %v963
        %v980 = vpack.c.b16 %v966, %v965
        %v981 = vpack.c.b16 %v968, %v967
        %v982 = vpack.c.b16 %v970, %v969
        %v983 = vpack.c.b16 %v972, %v971
        %v984 = vpack.c.b16 %v974, %v973
        %v985 = vpack.c.b16 %v976, %v975
        %v986 = vpack.c.b16 %v978, %v977
        %995 = vmatprep.subr.bf16.mxu0 0
        %996 = vmatpush1.bf16.msra.mxu0 %v979
        %997 = vmatprep.subr.bf16.mxu0 0
        %998 = vmatpush1.bf16.msra.mxu0 %v980
        %999 = vmatprep.subr.bf16.mxu0 0
        %1000 = vmatpush1.bf16.msra.mxu0 %v981
        %1001 = vmatprep.subr.bf16.mxu0 0
        %1002 = vmatpush1.bf16.msra.mxu0 %v982
        %1003 = vmatprep.subr.bf16.mxu0 0
        %1004 = vmatpush1.bf16.msra.mxu0 %v983
        %1005 = vmatprep.subr.bf16.mxu0 0
        %1006 = vmatpush1.bf16.msra.mxu0 %v984
        %1007 = vmatprep.subr.bf16.mxu0 0
        %1008 = vmatpush1.bf16.msra.mxu0 %v985
        %1009 = vmatprep.subr.bf16.mxu0 0
        %1010 = vmatpush1.bf16.msra.mxu0 %v986
        %1011 = vmatprep.subr.bf16.mxu0 0
        %1012 = vmatpush1.bf16.msra.mxu0 0
        %1013 = vmatprep.subr.bf16.mxu0 0
        %1014 = vmatpush1.bf16.msra.mxu0 0
        %1015 = vmatprep.subr.bf16.mxu0 0
        %1016 = vmatpush1.bf16.msra.mxu0 0
        %1017 = vmatprep.subr.bf16.mxu0 0
        %1018 = vmatpush1.bf16.msra.mxu0 0
        %1019 = vmatprep.subr.bf16.mxu0 0
        %1020 = vmatpush1.bf16.msra.mxu0 0
        %1021 = vmatprep.subr.bf16.mxu0 0
        %1022 = vmatpush1.bf16.msra.mxu0 0
        %1023 = vmatprep.subr.bf16.mxu0 0
        %1024 = vmatpush1.bf16.msra.mxu0 0
        %1025 = vmatprep.subr.bf16.mxu0 0
        %1026 = vmatpush1.bf16.msra.mxu0 0
        %1027 = vmatprep.mubr.bf16.mxu0 0
        %1028 = vmatmul.mubr.bf16.gmra.mrb[0].mxu0 %v928
        %v1029 = vpop.f32.mrb[0].mxu0
        %v1030 = vadd.f32 0.0, %v1029
        %v1031 = vpop.f32.mrb[0].mxu0
        %v1032 = vpop.f32.mrb[0].mxu0
        %v1033 = vpop.f32.mrb[0].mxu0
        %1034 = vdwg.mxu0
        %v1035 = vadd.f32 %v927, %v1030
        %1036 = vst [vmem:[%s471] sm:$0xff] %v1035
        %p1037 = scmp.eq.s32.totalorder %s35, 3
        // Predicated region
        $region89: #{tpu_custom_call.1} parent=63 // pred_check
          %p1038 = pneg %p1037
        $region90: #{tpu_custom_call.1} parent=63 // pred_check_branch
          %1040 = sbr.rel (%p1038) target = $region92
        $region91: #{tpu_custom_call.1} parent=63 // pred_region
          %v1041 = vld [vmem:[%s471] sm:$0xff]
          %v1042 = vadd.f32 %v478, %v1041
          %v1043 = vld [vmem:[%s8] sm:$0x1]
          %v1045 = vlaneseq
          %v1046 = vshrl.u32 %v1045, 7
          %v1047 = vsub.s32 0, %v1046
          %v1048 = vrot.slane %v1043, %v1047
          %v1050 = vadd.f32 %v1042, %v1048
          %1051 = vadd.xlane.f32.xlu0 %v1050
          %v1052 = vpop.xlane.xlu0 %1051
          %v1053 = vmul.f32 %v1052, 0.03125
          %v1054 = vmul.f32 %v1050, %v1050
          %1055 = vadd.xlane.f32.xlu0 %v1054
          %v1056 = vpop.xlane.xlu0 %1055
          %v1057 = vmul.f32 %v1056, 0.03125
          %v1058 = vmul.f32 %v1053, %v1053
          %v1059 = vsub.f32 %v1057, %v1058
          %v1060 = vsub.f32 %v1050, %v1053
          %v1061 = vadd.f32 %v1059, 1e-05
          %v1062 = vrsqrt.pop %v1061
          %v1063 = vmul.f32 %v1060, %v1062
          %v1064 = vld [vmem:[%s9] sm:$0x1]
          %v1066 = vlaneseq
          %v1067 = vshrl.u32 %v1066, 7
          %v1068 = vsub.s32 0, %v1067
          %v1069 = vrot.slane %v1064, %v1068
          %v1071 = vmul.f32 %v1063, %v1069
          %v1072 = vld [vmem:[%s10] sm:$0x1]
          %v1074 = vlaneseq
          %v1075 = vshrl.u32 %v1074, 7
          %v1076 = vsub.s32 0, %v1075
          %v1077 = vrot.slane %v1072, %v1076
          %v1079 = vadd.f32 %v1071, %v1077
          %1080 = vst [vmem:[%s471] sm:$0xff] %v1079
        $region92: #{tpu_custom_call.1} parent=63 // pred_fallthru
          _
        %s1081 = sand.u32 %s286, 1
        %s1082 = scalar_lea.sflag [#allocation4], %s1081
        %s1083 = sand.u32 %s286, 1
        %s1084 = smul.addr %s1083, 8
        %s1085 = scalar_lea.vmem [#allocation11], %s1084
        // Predicated region
        $region93: #{tpu_custom_call.1} parent=63 // pred_check
          %p1086 = pneg %p296
        $region94: #{tpu_custom_call.1} parent=63 // pred_check_branch
          %1088 = sbr.rel (%p1086) target = $region96
        $region95: #{tpu_custom_call.1} parent=63 // pred_region
          %s1090 = ssub.s32 128, 128
          %1091 = vsyncadd %s1082, %s1090
          %s1092 = smul.addr %s34, 128
          %s1093 = scalar_lea.hbm %s11, %s1092
          %s1095 = sshll.u32 %s1085, 4
          %s1096 = int_to_ptr.vmem [resolvable:$true] %s1095
          %1098 = dma.vmem_to_hbm [thread:$0]  %s1096, 128, %s1093, %s1082
        $region96: #{tpu_custom_call.1} parent=63 // pred_fallthru
          _
      $region64: #{tpu_custom_call.1} parent=5 // pred_fallthru
        _
      %p1099 = scmp.le.s32.totalorder 2, %s25
      // Predicated region
      $region97: #{tpu_custom_call.1} parent=5 // pred_check
        %p1100 = pneg %p1099
      $region98: #{tpu_custom_call.1} parent=5 // pred_check_branch
        %1102 = sbr.rel (%p1100) target = $region100
      $region99: #{tpu_custom_call.1} parent=5 // pred_region
        %s1103 = ssub.s32 %s25, 2
        // Predicated region
        $region101: #{tpu_custom_call.1} parent=99 // pred_check
          %p1104 = pneg %p302
        $region102: #{tpu_custom_call.1} parent=99 // pred_check_branch
          %1106 = sbr.rel (%p1104) target = $region104
        $region103: #{tpu_custom_call.1} parent=99 // pred_region
          %s1107 = sand.u32 %s287, 1
          %s1108 = scalar_lea.sflag [#allocation4], %s1107
          %s1109 = sand.u32 %s287, 1
          %s1110 = smul.addr %s1109, 8
          %s1111 = scalar_lea.vmem [#allocation11], %s1110
          %1112 = dma.done %s1108, 128
        $region104: #{tpu_custom_call.1} parent=99 // pred_fallthru
          _
      $region100: #{tpu_custom_call.1} parent=5 // pred_fallthru
        _
    $region6: #{tpu_custom_call.1} parent=1 // loop_footer
      %s29 = sadd.s32 1, %s25
    $region7: #{tpu_custom_call.1} parent=1 // loop_footer_branch
      %24 = sbr.rel target = $region3
    $region8: #{tpu_custom_call.1} parent=1 // loop_exit
      _
    %1113 = vsyncpa [#allocation3], 1
    %s1114 = scalar_lea.sflag [#allocation3], 1
    %1115 = vsyncpa %s1114, 1
    %1116 = vsyncpa [#allocation6], 1
    %1117 = vsyncpa [#allocation9], 1
    %1118 = vsyncpa [#allocation4], 1
    %s1119 = scalar_lea.sflag [#allocation4], 1
    %1120 = vsyncpa %s1119, 1

</llo_original>
